<compile_context>
chip_gen: v5e
topology: v5e:2x2
jax: 0.10.0
libtpu: 0.0.40
codegen_flags: <defaults>
</compile_context>

<pallas_src>
import jax
import jax.numpy as jnp
from jax.experimental import pallas as pl
from jax.experimental.pallas import tpu as pltpu


# ---------------------------------------------------------------------------
# Fused kernel: encoder layer (CLS-query attention) + CLS pooling + regression
# head.  One grid step covers a (Bt, S, H) batch tile; all matmuls operate on
# flattened 2-D operands with bf16 inputs / f32 accumulation.
# ---------------------------------------------------------------------------
def _fused_forward_kernel(x_ref, mask_ref,
                          wq_ref, bq_ref, wk_ref, bk_ref, wv_ref, bv_ref,
                          wo_ref, bo_ref,
                          w1_ref, b1_ref, w2_ref, b2_ref,
                          g1_ref, be1_ref, g2_ref, be2_ref,
                          hw1_ref, hb1_ref, hw2_ref, hb2_ref,
                          out_ref):
    x = x_ref[...]                               # (Bt, S, H) f32
    mask = mask_ref[...]                         # (Bt, S)    f32 {0,1}
    Bt, S, H = x.shape
    scale = 1.0 / (float(H) ** 0.5)
    bf16 = jnp.bfloat16

    # ---- K/V projections over all positions: one flattened (Bt*S, H) matmul each
    x2 = x.reshape(Bt * S, H).astype(bf16)
    k = (jnp.dot(x2, wk_ref[...], preferred_element_type=jnp.float32)
         + bk_ref[...]).reshape(Bt, S, H)        # (Bt, S, H) f32
    v = (jnp.dot(x2, wv_ref[...], preferred_element_type=jnp.float32)
         + bv_ref[...]).reshape(Bt, S, H)        # (Bt, S, H) f32

    # ---- Q projection on the CLS rows only (everything downstream is CLS-only)
    x_cls = x[:, 0, :]                           # (Bt, H) f32
    q = jnp.dot(x_cls.astype(bf16), wq_ref[...],
                preferred_element_type=jnp.float32) + bq_ref[...]       # (Bt, H)

    # ---- CLS-query attention.  One query row per batch element => batched
    #      matvec; done on the VPU (broadcast-mul + reduce) in f32.  Scores are
    #      only (Bt, S): no (S, S) matrix, so no flash tiling is needed even at
    #      real S (the K/V tensors are the only S-sized intermediates).
    scores = jnp.sum(q[:, None, :] * k, axis=-1) * scale                # (Bt, S)
    scores = scores + (1.0 - mask) * (-1e9)      # HF-style additive key mask
    scores = scores - jnp.max(scores, axis=-1, keepdims=True)
    p = jnp.exp(scores)
    p = p / jnp.sum(p, axis=-1, keepdims=True)   # exact softmax (f32)
    attn = jnp.sum(p[:, :, None] * v, axis=1)    # (Bt, H) f32

    attn = jnp.dot(attn.astype(bf16), wo_ref[...],
                   preferred_element_type=jnp.float32) + bo_ref[...]

    # ---- residual + LayerNorm 1 (eps=1e-12 per HF MoLFormer config) ---------
    h = x_cls + attn
    mu = jnp.mean(h, axis=-1, keepdims=True)
    var = jnp.mean((h - mu) ** 2, axis=-1, keepdims=True)
    h = (h - mu) * jax.lax.rsqrt(var + 1e-12) * g1_ref[...] + be1_ref[...]

    # ---- FFN on the CLS rows only --------------------------------------------
    f = jnp.dot(h.astype(bf16), w1_ref[...],
                preferred_element_type=jnp.float32) + b1_ref[...]
    f = jnp.maximum(f, 0.0)
    f = jnp.dot(f.astype(bf16), w2_ref[...],
                preferred_element_type=jnp.float32) + b2_ref[...]

    # ---- residual + LayerNorm 2 ----------------------------------------------
    h2 = h + f
    mu2 = jnp.mean(h2, axis=-1, keepdims=True)
    var2 = jnp.mean((h2 - mu2) ** 2, axis=-1, keepdims=True)
    h2 = (h2 - mu2) * jax.lax.rsqrt(var2 + 1e-12) * g2_ref[...] + be2_ref[...]

    # ---- regression head: Linear(H, H//2) -> ReLU -> Linear(H//2, 1) ---------
    hh = jnp.dot(h2.astype(bf16), hw1_ref[...],
                 preferred_element_type=jnp.float32) + hb1_ref[...]     # (Bt, H//2)
    hh = jnp.maximum(hh, 0.0)
    # Final Linear(H//2, 1) as a lane reduction (avoids a 1-output-lane MXU pass).
    # Single (Bt, 1) store for the whole step.
    # TODO(synk): for large B, accumulate into a lane-dense (1, B) slab instead.
    out_ref[...] = jnp.sum(hh * hw2_ref[...], axis=-1, keepdims=True) + hb2_ref[...]


# ---------------------------------------------------------------------------
# Wrapper
# ---------------------------------------------------------------------------
def molformer_with_regression_head(input_ids, attention_mask, params, *,
                                   batch_tile=None):
    """Embedding lookup in plain JAX; everything downstream in one Pallas kernel."""
    x_emb = jnp.take(params['embed'], input_ids, axis=0)          # (B, S, H) f32
    mask = attention_mask.astype(jnp.float32)                     # (B, S)
    B, S, H = x_emb.shape

    # Whole batch in ONE grid step at small B (per-step overhead dominates toy
    # shapes).  For large B pass a multiple-of-8 batch_tile giving >= 2 steps so
    # both v7x TensorCores get work ("parallel" axis; no-op on v5e/v6e).
    Bt = B if batch_tile is None else batch_tile
    grid = (pl.cdiv(B, Bt),)

    weights = (params['wq'], params['bq'], params['wk'], params['bk'],
               params['wv'], params['bv'], params['wo'], params['bo'],
               params['ffn_w1'], params['ffn_b1'], params['ffn_w2'], params['ffn_b2'],
               params['ln1_g'], params['ln1_b'], params['ln2_g'], params['ln2_b'],
               params['head_w1'], params['head_b1'], params['head_w2'], params['head_b2'])

    def rep_spec(w):
        zeros = (0,) * w.ndim
        # Same block every step (replicated weights).
        return pl.BlockSpec(w.shape, lambda b, _z=zeros: _z)

    in_specs = ([pl.BlockSpec((Bt, S, H), lambda b: (b, 0, 0)),   # per-tile activations
                 pl.BlockSpec((Bt, S), lambda b: (b, 0))]         # per-tile mask
                + [rep_spec(w) for w in weights])

    return pl.pallas_call(
        _fused_forward_kernel,
        out_shape=jax.ShapeDtypeStruct((B, 1), jnp.float32),
        grid=grid,
        in_specs=in_specs,
        out_specs=pl.BlockSpec((Bt, 1), lambda b: (b, 0)),
        compiler_params=pltpu.CompilerParams(
            dimension_semantics=("parallel",),       # megacore over batch tiles (v7x)
            vmem_limit_bytes=32 * 1024 * 1024),      # plenty at toy size, v7x-safe
    )(x_emb, mask, *weights)


# ---------------------------------------------------------------------------
# Deterministic parameter init (synthetic; shapes follow the module __init__).
# Matmul weights are stored in bf16; biases / LN params / lane-reduction head
# weight stay f32.
# ---------------------------------------------------------------------------
def init_params(key, vocab=64, hidden=32, ffn=64):
    ks = jax.random.split(key, 9)
    s = 0.02

    def w(k, shape):
        return (s * jax.random.normal(k, shape, jnp.float32)).astype(jnp.bfloat16)

    return {
        'embed':   s * jax.random.normal(ks[0], (vocab, hidden), jnp.float32),
        'wq':      w(ks[1], (hidden, hidden)),
        'bq':      jnp.zeros((1, hidden), jnp.float32),
        'wk':      w(ks[2], (hidden, hidden)),
        'bk':      jnp.zeros((1, hidden), jnp.float32),
        'wv':      w(ks[3], (hidden, hidden)),
        'bv':      jnp.zeros((1, hidden), jnp.float32),
        'wo':      w(ks[4], (hidden, hidden)),
        'bo':      jnp.zeros((1, hidden), jnp.float32),
        'ffn_w1':  w(ks[5], (hidden, ffn)),
        'ffn_b1':  jnp.zeros((1, ffn), jnp.float32),
        'ffn_w2':  w(ks[6], (ffn, hidden)),
        'ffn_b2':  jnp.zeros((1, hidden), jnp.float32),
        'ln1_g':   jnp.ones((1, hidden), jnp.float32),
        'ln1_b':   jnp.zeros((1, hidden), jnp.float32),
        'ln2_g':   jnp.ones((1, hidden), jnp.float32),
        'ln2_b':   jnp.zeros((1, hidden), jnp.float32),
        # regression head: Linear(H, H//2) -> ReLU -> Linear(H//2, 1)
        # head_w1 stored as (in, out) == PyTorch W.T; head_w2 stored as the
        # (1, H//2) PyTorch weight row (used as a lane reduction).
        'head_w1': w(ks[7], (hidden, hidden // 2)),
        'head_b1': jnp.zeros((1, hidden // 2), jnp.float32),
        'head_w2': s * jax.random.normal(ks[8], (1, hidden // 2), jnp.float32),
        'head_b2': jnp.zeros((1, 1), jnp.float32),
    }


# ---------------------------------------------------------------------------
if __name__ == "__main__":
    B, S, H, VOCAB = 2, 8, 32, 64
    key = jax.random.PRNGKey(0)
    k_ids, k_params = jax.random.split(key)

    input_ids = jax.random.randint(k_ids, (B, S), 0, VOCAB, dtype=jnp.int32)
    attention_mask = jnp.array(
        [[1, 1, 1, 1, 1, 1, 1, 1],
         [1, 1, 1, 1, 1, 0, 0, 0]], dtype=jnp.int32)

    params = init_params(k_params, vocab=VOCAB, hidden=H)

    out = molformer_with_regression_head(input_ids, attention_mask, params)
    out = jax.block_until_ready(out)
    assert out.shape == (B, 1) and out.dtype == jnp.float32
    assert bool(jnp.all(jnp.isfinite(out)))
    print("KERNEL_OK")
</pallas_src>

<mosaic_0001>
module attributes {stable_mosaic.version = 11 : i64} {
  func.func @_fused_forward_kernel(%arg0: i32, %arg1: memref<2x8x32xf32, #tpu.memory_space<vmem>>, %arg2: memref<2x8xf32, #tpu.memory_space<vmem>>, %arg3: memref<32x32xbf16, #tpu.memory_space<vmem>>, %arg4: memref<1x32xf32, #tpu.memory_space<vmem>>, %arg5: memref<32x32xbf16, #tpu.memory_space<vmem>>, %arg6: memref<1x32xf32, #tpu.memory_space<vmem>>, %arg7: memref<32x32xbf16, #tpu.memory_space<vmem>>, %arg8: memref<1x32xf32, #tpu.memory_space<vmem>>, %arg9: memref<32x32xbf16, #tpu.memory_space<vmem>>, %arg10: memref<1x32xf32, #tpu.memory_space<vmem>>, %arg11: memref<32x64xbf16, #tpu.memory_space<vmem>>, %arg12: memref<1x64xf32, #tpu.memory_space<vmem>>, %arg13: memref<64x32xbf16, #tpu.memory_space<vmem>>, %arg14: memref<1x32xf32, #tpu.memory_space<vmem>>, %arg15: memref<1x32xf32, #tpu.memory_space<vmem>>, %arg16: memref<1x32xf32, #tpu.memory_space<vmem>>, %arg17: memref<1x32xf32, #tpu.memory_space<vmem>>, %arg18: memref<1x32xf32, #tpu.memory_space<vmem>>, %arg19: memref<32x16xbf16, #tpu.memory_space<vmem>>, %arg20: memref<1x16xf32, #tpu.memory_space<vmem>>, %arg21: memref<1x16xf32, #tpu.memory_space<vmem>>, %arg22: memref<1x1xf32, #tpu.memory_space<vmem>>, %arg23: memref<2x1xf32, #tpu.memory_space<vmem>>) attributes {dimension_semantics = [#tpu.dimension_semantics<parallel>], iteration_bounds = array<i64: 1>, scalar_prefetch = 0 : i64, scratch_operands = 0 : i64, tpu.core_type = #tpu.core_type<tc>, window_params = [{transform_indices = @transform_0, window_bounds = array<i64: 2, 8, 32>}, {transform_indices = @transform_1, window_bounds = array<i64: 2, 8>}, {pipeline_mode = #tpu.pipeline_mode<synchronous>, transform_indices = @transform_2, window_bounds = array<i64: 32, 32>}, {pipeline_mode = #tpu.pipeline_mode<synchronous>, transform_indices = @transform_3, window_bounds = array<i64: 1, 32>}, {pipeline_mode = #tpu.pipeline_mode<synchronous>, transform_indices = @transform_4, window_bounds = array<i64: 32, 32>}, {pipeline_mode = #tpu.pipeline_mode<synchronous>, transform_indices = @transform_5, window_bounds = array<i64: 1, 32>}, {pipeline_mode = #tpu.pipeline_mode<synchronous>, transform_indices = @transform_6, window_bounds = array<i64: 32, 32>}, {pipeline_mode = #tpu.pipeline_mode<synchronous>, transform_indices = @transform_7, window_bounds = array<i64: 1, 32>}, {pipeline_mode = #tpu.pipeline_mode<synchronous>, transform_indices = @transform_8, window_bounds = array<i64: 32, 32>}, {pipeline_mode = #tpu.pipeline_mode<synchronous>, transform_indices = @transform_9, window_bounds = array<i64: 1, 32>}, {pipeline_mode = #tpu.pipeline_mode<synchronous>, transform_indices = @transform_10, window_bounds = array<i64: 32, 64>}, {pipeline_mode = #tpu.pipeline_mode<synchronous>, transform_indices = @transform_11, window_bounds = array<i64: 1, 64>}, {pipeline_mode = #tpu.pipeline_mode<synchronous>, transform_indices = @transform_12, window_bounds = array<i64: 64, 32>}, {pipeline_mode = #tpu.pipeline_mode<synchronous>, transform_indices = @transform_13, window_bounds = array<i64: 1, 32>}, {pipeline_mode = #tpu.pipeline_mode<synchronous>, transform_indices = @transform_14, window_bounds = array<i64: 1, 32>}, {pipeline_mode = #tpu.pipeline_mode<synchronous>, transform_indices = @transform_15, window_bounds = array<i64: 1, 32>}, {pipeline_mode = #tpu.pipeline_mode<synchronous>, transform_indices = @transform_16, window_bounds = array<i64: 1, 32>}, {pipeline_mode = #tpu.pipeline_mode<synchronous>, transform_indices = @transform_17, window_bounds = array<i64: 1, 32>}, {pipeline_mode = #tpu.pipeline_mode<synchronous>, transform_indices = @transform_18, window_bounds = array<i64: 32, 16>}, {pipeline_mode = #tpu.pipeline_mode<synchronous>, transform_indices = @transform_19, window_bounds = array<i64: 1, 16>}, {pipeline_mode = #tpu.pipeline_mode<synchronous>, transform_indices = @transform_20, window_bounds = array<i64: 1, 16>}, {pipeline_mode = #tpu.pipeline_mode<synchronous>, transform_indices = @transform_21, window_bounds = array<i64: 1, 1>}, {transform_indices = @transform_22, window_bounds = array<i64: 2, 1>}]} {
    %c0 = arith.constant 0 : index
    %c0_0 = arith.constant 0 : index
    %c0_1 = arith.constant 0 : index
    %0 = vector.load %arg1[%c0, %c0_0, %c0_1] : memref<2x8x32xf32, #tpu.memory_space<vmem>>, vector<2x8x32xf32>
    %c0_2 = arith.constant 0 : index
    %c0_3 = arith.constant 0 : index
    %1 = vector.load %arg2[%c0_2, %c0_3] : memref<2x8xf32, #tpu.memory_space<vmem>>, vector<2x8xf32>
    %2 = vector.shape_cast %0 : vector<2x8x32xf32> to vector<16x32xf32>
    %3 = arith.truncf %2 : vector<16x32xf32> to vector<16x32xbf16>
    %c0_4 = arith.constant 0 : index
    %c0_5 = arith.constant 0 : index
    %4 = vector.load %arg5[%c0_4, %c0_5] : memref<32x32xbf16, #tpu.memory_space<vmem>>, vector<32x32xbf16>
    %cst = arith.constant dense<0.000000e+00> : vector<16x32xf32>
    %5 = tpu.matmul %3, %4, %cst {dimension_numbers = #tpu.dot_dimension_numbers<[1], [0], [0], [1], [0, 0, 1, 1], [], []>} : vector<16x32xbf16>, vector<32x32xbf16>, vector<16x32xf32> -> vector<16x32xf32>
    %c0_6 = arith.constant 0 : index
    %c0_7 = arith.constant 0 : index
    %6 = vector.load %arg6[%c0_6, %c0_7] : memref<1x32xf32, #tpu.memory_space<vmem>>, vector<1x32xf32>
    %7 = vector.broadcast %6 : vector<1x32xf32> to vector<16x32xf32>
    %8 = arith.addf %5, %7 : vector<16x32xf32>
    %9 = vector.shape_cast %8 : vector<16x32xf32> to vector<2x8x32xf32>
    %c0_8 = arith.constant 0 : index
    %c0_9 = arith.constant 0 : index
    %10 = vector.load %arg7[%c0_8, %c0_9] : memref<32x32xbf16, #tpu.memory_space<vmem>>, vector<32x32xbf16>
    %cst_10 = arith.constant dense<0.000000e+00> : vector<16x32xf32>
    %11 = tpu.matmul %3, %10, %cst_10 {dimension_numbers = #tpu.dot_dimension_numbers<[1], [0], [0], [1], [0, 0, 1, 1], [], []>} : vector<16x32xbf16>, vector<32x32xbf16>, vector<16x32xf32> -> vector<16x32xf32>
    %c0_11 = arith.constant 0 : index
    %c0_12 = arith.constant 0 : index
    %12 = vector.load %arg8[%c0_11, %c0_12] : memref<1x32xf32, #tpu.memory_space<vmem>>, vector<1x32xf32>
    %13 = vector.broadcast %12 : vector<1x32xf32> to vector<16x32xf32>
    %14 = arith.addf %11, %13 : vector<16x32xf32>
    %15 = vector.shape_cast %14 : vector<16x32xf32> to vector<2x8x32xf32>
    %16 = vector.extract_strided_slice %0 {offsets = [0, 0, 0], sizes = [2, 1, 32], strides = [1, 1, 1]} : vector<2x8x32xf32> to vector<2x1x32xf32>
    %17 = vector.shape_cast %16 : vector<2x1x32xf32> to vector<2x32xf32>
    %18 = arith.truncf %17 : vector<2x32xf32> to vector<2x32xbf16>
    %c0_13 = arith.constant 0 : index
    %c0_14 = arith.constant 0 : index
    %19 = vector.load %arg3[%c0_13, %c0_14] : memref<32x32xbf16, #tpu.memory_space<vmem>>, vector<32x32xbf16>
    %cst_15 = arith.constant dense<0.000000e+00> : vector<2x32xf32>
    %20 = tpu.matmul %18, %19, %cst_15 {dimension_numbers = #tpu.dot_dimension_numbers<[1], [0], [0], [1], [0, 0, 1, 1], [], []>} : vector<2x32xbf16>, vector<32x32xbf16>, vector<2x32xf32> -> vector<2x32xf32>
    %c0_16 = arith.constant 0 : index
    %c0_17 = arith.constant 0 : index
    %21 = vector.load %arg4[%c0_16, %c0_17] : memref<1x32xf32, #tpu.memory_space<vmem>>, vector<1x32xf32>
    %22 = vector.broadcast %21 : vector<1x32xf32> to vector<2x32xf32>
    %23 = arith.addf %20, %22 : vector<2x32xf32>
    %24 = vector.shape_cast %23 : vector<2x32xf32> to vector<2x1x32xf32>
    %25 = vector.broadcast %24 : vector<2x1x32xf32> to vector<2x8x32xf32>
    %26 = arith.mulf %25, %9 : vector<2x8x32xf32>
    %cst_18 = arith.constant dense<0.000000e+00> : vector<2x8xf32>
    %27 = vector.multi_reduction <add>, %26, %cst_18 [2] : vector<2x8x32xf32> to vector<2x8xf32>
    %cst_19 = arith.constant 0.176776692 : f32
    %28 = vector.broadcast %cst_19 : f32 to vector<2x8xf32>
    %29 = arith.mulf %27, %28 : vector<2x8xf32>
    %cst_20 = arith.constant 1.000000e+00 : f32
    %30 = vector.broadcast %cst_20 : f32 to vector<2x8xf32>
    %31 = arith.subf %30, %1 : vector<2x8xf32>
    %cst_21 = arith.constant -1.000000e+09 : f32
    %32 = vector.broadcast %cst_21 : f32 to vector<2x8xf32>
    %33 = arith.mulf %31, %32 : vector<2x8xf32>
    %34 = arith.addf %29, %33 : vector<2x8xf32>
    %cst_22 = arith.constant dense<0xFF800000> : vector<2xf32>
    %35 = vector.multi_reduction <maximumf>, %34, %cst_22 [1] : vector<2x8xf32> to vector<2xf32>
    %36 = vector.shape_cast %35 : vector<2xf32> to vector<2x1xf32>
    %37 = vector.broadcast %36 : vector<2x1xf32> to vector<2x8xf32>
    %38 = arith.subf %34, %37 : vector<2x8xf32>
    %39 = math.exp %38 : vector<2x8xf32>
    %cst_23 = arith.constant dense<0.000000e+00> : vector<2xf32>
    %40 = vector.multi_reduction <add>, %39, %cst_23 [1] : vector<2x8xf32> to vector<2xf32>
    %41 = vector.shape_cast %40 : vector<2xf32> to vector<2x1xf32>
    %42 = vector.broadcast %41 : vector<2x1xf32> to vector<2x8xf32>
    %43 = arith.divf %39, %42 : vector<2x8xf32>
    %44 = vector.shape_cast %43 : vector<2x8xf32> to vector<2x8x1xf32>
    %45 = vector.broadcast %44 : vector<2x8x1xf32> to vector<2x8x32xf32>
    %46 = arith.mulf %45, %15 : vector<2x8x32xf32>
    %cst_24 = arith.constant dense<0.000000e+00> : vector<2x32xf32>
    %47 = vector.multi_reduction <add>, %46, %cst_24 [1] : vector<2x8x32xf32> to vector<2x32xf32>
    %48 = arith.truncf %47 : vector<2x32xf32> to vector<2x32xbf16>
    %c0_25 = arith.constant 0 : index
    %c0_26 = arith.constant 0 : index
    %49 = vector.load %arg9[%c0_25, %c0_26] : memref<32x32xbf16, #tpu.memory_space<vmem>>, vector<32x32xbf16>
    %cst_27 = arith.constant dense<0.000000e+00> : vector<2x32xf32>
    %50 = tpu.matmul %48, %49, %cst_27 {dimension_numbers = #tpu.dot_dimension_numbers<[1], [0], [0], [1], [0, 0, 1, 1], [], []>} : vector<2x32xbf16>, vector<32x32xbf16>, vector<2x32xf32> -> vector<2x32xf32>
    %c0_28 = arith.constant 0 : index
    %c0_29 = arith.constant 0 : index
    %51 = vector.load %arg10[%c0_28, %c0_29] : memref<1x32xf32, #tpu.memory_space<vmem>>, vector<1x32xf32>
    %52 = vector.broadcast %51 : vector<1x32xf32> to vector<2x32xf32>
    %53 = arith.addf %50, %52 : vector<2x32xf32>
    %54 = arith.addf %17, %53 : vector<2x32xf32>
    %cst_30 = arith.constant dense<0.000000e+00> : vector<2xf32>
    %55 = vector.multi_reduction <add>, %54, %cst_30 [1] : vector<2x32xf32> to vector<2xf32>
    %56 = vector.shape_cast %55 : vector<2xf32> to vector<2x1xf32>
    %cst_31 = arith.constant 3.200000e+01 : f32
    %57 = vector.broadcast %cst_31 : f32 to vector<2x1xf32>
    %58 = arith.divf %56, %57 : vector<2x1xf32>
    %59 = vector.broadcast %58 : vector<2x1xf32> to vector<2x32xf32>
    %60 = arith.subf %54, %59 : vector<2x32xf32>
    %61 = arith.mulf %60, %60 : vector<2x32xf32>
    %cst_32 = arith.constant dense<0.000000e+00> : vector<2xf32>
    %62 = vector.multi_reduction <add>, %61, %cst_32 [1] : vector<2x32xf32> to vector<2xf32>
    %63 = vector.shape_cast %62 : vector<2xf32> to vector<2x1xf32>
    %cst_33 = arith.constant 3.200000e+01 : f32
    %64 = vector.broadcast %cst_33 : f32 to vector<2x1xf32>
    %65 = arith.divf %63, %64 : vector<2x1xf32>
    %66 = vector.broadcast %58 : vector<2x1xf32> to vector<2x32xf32>
    %67 = arith.subf %54, %66 : vector<2x32xf32>
    %cst_34 = arith.constant 9.99999996E-13 : f32
    %68 = vector.broadcast %cst_34 : f32 to vector<2x1xf32>
    %69 = arith.addf %65, %68 : vector<2x1xf32>
    %70 = math.rsqrt %69 : vector<2x1xf32>
    %71 = vector.broadcast %70 : vector<2x1xf32> to vector<2x32xf32>
    %72 = arith.mulf %67, %71 : vector<2x32xf32>
    %c0_35 = arith.constant 0 : index
    %c0_36 = arith.constant 0 : index
    %73 = vector.load %arg15[%c0_35, %c0_36] : memref<1x32xf32, #tpu.memory_space<vmem>>, vector<1x32xf32>
    %74 = vector.broadcast %73 : vector<1x32xf32> to vector<2x32xf32>
    %75 = arith.mulf %72, %74 : vector<2x32xf32>
    %c0_37 = arith.constant 0 : index
    %c0_38 = arith.constant 0 : index
    %76 = vector.load %arg16[%c0_37, %c0_38] : memref<1x32xf32, #tpu.memory_space<vmem>>, vector<1x32xf32>
    %77 = vector.broadcast %76 : vector<1x32xf32> to vector<2x32xf32>
    %78 = arith.addf %75, %77 : vector<2x32xf32>
    %79 = arith.truncf %78 : vector<2x32xf32> to vector<2x32xbf16>
    %c0_39 = arith.constant 0 : index
    %c0_40 = arith.constant 0 : index
    %80 = vector.load %arg11[%c0_39, %c0_40] : memref<32x64xbf16, #tpu.memory_space<vmem>>, vector<32x64xbf16>
    %cst_41 = arith.constant dense<0.000000e+00> : vector<2x64xf32>
    %81 = tpu.matmul %79, %80, %cst_41 {dimension_numbers = #tpu.dot_dimension_numbers<[1], [0], [0], [1], [0, 0, 1, 1], [], []>} : vector<2x32xbf16>, vector<32x64xbf16>, vector<2x64xf32> -> vector<2x64xf32>
    %c0_42 = arith.constant 0 : index
    %c0_43 = arith.constant 0 : index
    %82 = vector.load %arg12[%c0_42, %c0_43] : memref<1x64xf32, #tpu.memory_space<vmem>>, vector<1x64xf32>
    %83 = vector.broadcast %82 : vector<1x64xf32> to vector<2x64xf32>
    %84 = arith.addf %81, %83 : vector<2x64xf32>
    %cst_44 = arith.constant 0.000000e+00 : f32
    %85 = vector.broadcast %cst_44 : f32 to vector<2x64xf32>
    %86 = arith.maximumf %84, %85 : vector<2x64xf32>
    %87 = arith.truncf %86 : vector<2x64xf32> to vector<2x64xbf16>
    %c0_45 = arith.constant 0 : index
    %c0_46 = arith.constant 0 : index
    %88 = vector.load %arg13[%c0_45, %c0_46] : memref<64x32xbf16, #tpu.memory_space<vmem>>, vector<64x32xbf16>
    %cst_47 = arith.constant dense<0.000000e+00> : vector<2x32xf32>
    %89 = tpu.matmul %87, %88, %cst_47 {dimension_numbers = #tpu.dot_dimension_numbers<[1], [0], [0], [1], [0, 0, 1, 1], [], []>} : vector<2x64xbf16>, vector<64x32xbf16>, vector<2x32xf32> -> vector<2x32xf32>
    %c0_48 = arith.constant 0 : index
    %c0_49 = arith.constant 0 : index
    %90 = vector.load %arg14[%c0_48, %c0_49] : memref<1x32xf32, #tpu.memory_space<vmem>>, vector<1x32xf32>
    %91 = vector.broadcast %90 : vector<1x32xf32> to vector<2x32xf32>
    %92 = arith.addf %89, %91 : vector<2x32xf32>
    %93 = arith.addf %78, %92 : vector<2x32xf32>
    %cst_50 = arith.constant dense<0.000000e+00> : vector<2xf32>
    %94 = vector.multi_reduction <add>, %93, %cst_50 [1] : vector<2x32xf32> to vector<2xf32>
    %95 = vector.shape_cast %94 : vector<2xf32> to vector<2x1xf32>
    %cst_51 = arith.constant 3.200000e+01 : f32
    %96 = vector.broadcast %cst_51 : f32 to vector<2x1xf32>
    %97 = arith.divf %95, %96 : vector<2x1xf32>
    %98 = vector.broadcast %97 : vector<2x1xf32> to vector<2x32xf32>
    %99 = arith.subf %93, %98 : vector<2x32xf32>
    %100 = arith.mulf %99, %99 : vector<2x32xf32>
    %cst_52 = arith.constant dense<0.000000e+00> : vector<2xf32>
    %101 = vector.multi_reduction <add>, %100, %cst_52 [1] : vector<2x32xf32> to vector<2xf32>
    %102 = vector.shape_cast %101 : vector<2xf32> to vector<2x1xf32>
    %cst_53 = arith.constant 3.200000e+01 : f32
    %103 = vector.broadcast %cst_53 : f32 to vector<2x1xf32>
    %104 = arith.divf %102, %103 : vector<2x1xf32>
    %105 = vector.broadcast %97 : vector<2x1xf32> to vector<2x32xf32>
    %106 = arith.subf %93, %105 : vector<2x32xf32>
    %cst_54 = arith.constant 9.99999996E-13 : f32
    %107 = vector.broadcast %cst_54 : f32 to vector<2x1xf32>
    %108 = arith.addf %104, %107 : vector<2x1xf32>
    %109 = math.rsqrt %108 : vector<2x1xf32>
    %110 = vector.broadcast %109 : vector<2x1xf32> to vector<2x32xf32>
    %111 = arith.mulf %106, %110 : vector<2x32xf32>
    %c0_55 = arith.constant 0 : index
    %c0_56 = arith.constant 0 : index
    %112 = vector.load %arg17[%c0_55, %c0_56] : memref<1x32xf32, #tpu.memory_space<vmem>>, vector<1x32xf32>
    %113 = vector.broadcast %112 : vector<1x32xf32> to vector<2x32xf32>
    %114 = arith.mulf %111, %113 : vector<2x32xf32>
    %c0_57 = arith.constant 0 : index
    %c0_58 = arith.constant 0 : index
    %115 = vector.load %arg18[%c0_57, %c0_58] : memref<1x32xf32, #tpu.memory_space<vmem>>, vector<1x32xf32>
    %116 = vector.broadcast %115 : vector<1x32xf32> to vector<2x32xf32>
    %117 = arith.addf %114, %116 : vector<2x32xf32>
    %118 = arith.truncf %117 : vector<2x32xf32> to vector<2x32xbf16>
    %c0_59 = arith.constant 0 : index
    %c0_60 = arith.constant 0 : index
    %119 = vector.load %arg19[%c0_59, %c0_60] : memref<32x16xbf16, #tpu.memory_space<vmem>>, vector<32x16xbf16>
    %cst_61 = arith.constant dense<0.000000e+00> : vector<2x16xf32>
    %120 = tpu.matmul %118, %119, %cst_61 {dimension_numbers = #tpu.dot_dimension_numbers<[1], [0], [0], [1], [0, 0, 1, 1], [], []>} : vector<2x32xbf16>, vector<32x16xbf16>, vector<2x16xf32> -> vector<2x16xf32>
    %c0_62 = arith.constant 0 : index
    %c0_63 = arith.constant 0 : index
    %121 = vector.load %arg20[%c0_62, %c0_63] : memref<1x16xf32, #tpu.memory_space<vmem>>, vector<1x16xf32>
    %122 = vector.broadcast %121 : vector<1x16xf32> to vector<2x16xf32>
    %123 = arith.addf %120, %122 : vector<2x16xf32>
    %cst_64 = arith.constant 0.000000e+00 : f32
    %124 = vector.broadcast %cst_64 : f32 to vector<2x16xf32>
    %125 = arith.maximumf %123, %124 : vector<2x16xf32>
    %c0_65 = arith.constant 0 : index
    %c0_66 = arith.constant 0 : index
    %126 = vector.load %arg21[%c0_65, %c0_66] : memref<1x16xf32, #tpu.memory_space<vmem>>, vector<1x16xf32>
    %127 = vector.broadcast %126 : vector<1x16xf32> to vector<2x16xf32>
    %128 = arith.mulf %125, %127 : vector<2x16xf32>
    %cst_67 = arith.constant dense<0.000000e+00> : vector<2xf32>
    %129 = vector.multi_reduction <add>, %128, %cst_67 [1] : vector<2x16xf32> to vector<2xf32>
    %130 = vector.shape_cast %129 : vector<2xf32> to vector<2x1xf32>
    %c0_68 = arith.constant 0 : index
    %c0_69 = arith.constant 0 : index
    %131 = vector.load %arg22[%c0_68, %c0_69] : memref<1x1xf32, #tpu.memory_space<vmem>>, vector<1x1xf32>
    %132 = vector.broadcast %131 : vector<1x1xf32> to vector<2x1xf32>
    %133 = arith.addf %130, %132 : vector<2x1xf32>
    %c0_70 = arith.constant 0 : index
    %c0_71 = arith.constant 0 : index
    %134 = vector.load %arg23[%c0_70, %c0_71] : memref<2x1xf32, #tpu.memory_space<vmem>>, vector<2x1xf32>
    tpu.vector_store %arg23[%c0_70, %c0_71], %133 {strides = array<i32>} : memref<2x1xf32, #tpu.memory_space<vmem>>, vector<2x1xf32>,
    return
  }
  func.func @transform_0(%arg0: i32) -> (i32, i32, i32) {
    %c0_i32 = arith.constant 0 : i32
    %c0_i32_0 = arith.constant 0 : i32
    %c0_i32_1 = arith.constant 0 : i32
    return %arg0, %c0_i32, %c0_i32_0 : i32, i32, i32
  }
  func.func @transform_1(%arg0: i32) -> (i32, i32) {
    %c0_i32 = arith.constant 0 : i32
    %c0_i32_0 = arith.constant 0 : i32
    return %arg0, %c0_i32 : i32, i32
  }
  func.func @transform_2(%arg0: i32) -> (i32, i32) {
    %c0_i32 = arith.constant 0 : i32
    %c0_i32_0 = arith.constant 0 : i32
    %c0_i32_1 = arith.constant 0 : i32
    return %c0_i32, %c0_i32_0 : i32, i32
  }
  func.func @transform_3(%arg0: i32) -> (i32, i32) {
    %c0_i32 = arith.constant 0 : i32
    %c0_i32_0 = arith.constant 0 : i32
    %c0_i32_1 = arith.constant 0 : i32
    return %c0_i32, %c0_i32_0 : i32, i32
  }
  func.func @transform_4(%arg0: i32) -> (i32, i32) {
    %c0_i32 = arith.constant 0 : i32
    %c0_i32_0 = arith.constant 0 : i32
    %c0_i32_1 = arith.constant 0 : i32
    return %c0_i32, %c0_i32_0 : i32, i32
  }
  func.func @transform_5(%arg0: i32) -> (i32, i32) {
    %c0_i32 = arith.constant 0 : i32
    %c0_i32_0 = arith.constant 0 : i32
    %c0_i32_1 = arith.constant 0 : i32
    return %c0_i32, %c0_i32_0 : i32, i32
  }
  func.func @transform_6(%arg0: i32) -> (i32, i32) {
    %c0_i32 = arith.constant 0 : i32
    %c0_i32_0 = arith.constant 0 : i32
    %c0_i32_1 = arith.constant 0 : i32
    return %c0_i32, %c0_i32_0 : i32, i32
  }
  func.func @transform_7(%arg0: i32) -> (i32, i32) {
    %c0_i32 = arith.constant 0 : i32
    %c0_i32_0 = arith.constant 0 : i32
    %c0_i32_1 = arith.constant 0 : i32
    return %c0_i32, %c0_i32_0 : i32, i32
  }
  func.func @transform_8(%arg0: i32) -> (i32, i32) {
    %c0_i32 = arith.constant 0 : i32
    %c0_i32_0 = arith.constant 0 : i32
    %c0_i32_1 = arith.constant 0 : i32
    return %c0_i32, %c0_i32_0 : i32, i32
  }
  func.func @transform_9(%arg0: i32) -> (i32, i32) {
    %c0_i32 = arith.constant 0 : i32
    %c0_i32_0 = arith.constant 0 : i32
    %c0_i32_1 = arith.constant 0 : i32
    return %c0_i32, %c0_i32_0 : i32, i32
  }
  func.func @transform_10(%arg0: i32) -> (i32, i32) {
    %c0_i32 = arith.constant 0 : i32
    %c0_i32_0 = arith.constant 0 : i32
    %c0_i32_1 = arith.constant 0 : i32
    return %c0_i32, %c0_i32_0 : i32, i32
  }
  func.func @transform_11(%arg0: i32) -> (i32, i32) {
    %c0_i32 = arith.constant 0 : i32
    %c0_i32_0 = arith.constant 0 : i32
    %c0_i32_1 = arith.constant 0 : i32
    return %c0_i32, %c0_i32_0 : i32, i32
  }
  func.func @transform_12(%arg0: i32) -> (i32, i32) {
    %c0_i32 = arith.constant 0 : i32
    %c0_i32_0 = arith.constant 0 : i32
    %c0_i32_1 = arith.constant 0 : i32
    return %c0_i32, %c0_i32_0 : i32, i32
  }
  func.func @transform_13(%arg0: i32) -> (i32, i32) {
    %c0_i32 = arith.constant 0 : i32
    %c0_i32_0 = arith.constant 0 : i32
    %c0_i32_1 = arith.constant 0 : i32
    return %c0_i32, %c0_i32_0 : i32, i32
  }
  func.func @transform_14(%arg0: i32) -> (i32, i32) {
    %c0_i32 = arith.constant 0 : i32
    %c0_i32_0 = arith.constant 0 : i32
    %c0_i32_1 = arith.constant 0 : i32
    return %c0_i32, %c0_i32_0 : i32, i32
  }
  func.func @transform_15(%arg0: i32) -> (i32, i32) {
    %c0_i32 = arith.constant 0 : i32
    %c0_i32_0 = arith.constant 0 : i32
    %c0_i32_1 = arith.constant 0 : i32
    return %c0_i32, %c0_i32_0 : i32, i32
  }
  func.func @transform_16(%arg0: i32) -> (i32, i32) {
    %c0_i32 = arith.constant 0 : i32
    %c0_i32_0 = arith.constant 0 : i32
    %c0_i32_1 = arith.constant 0 : i32
    return %c0_i32, %c0_i32_0 : i32, i32
  }
  func.func @transform_17(%arg0: i32) -> (i32, i32) {
    %c0_i32 = arith.constant 0 : i32
    %c0_i32_0 = arith.constant 0 : i32
    %c0_i32_1 = arith.constant 0 : i32
    return %c0_i32, %c0_i32_0 : i32, i32
  }
  func.func @transform_18(%arg0: i32) -> (i32, i32) {
    %c0_i32 = arith.constant 0 : i32
    %c0_i32_0 = arith.constant 0 : i32
    %c0_i32_1 = arith.constant 0 : i32
    return %c0_i32, %c0_i32_0 : i32, i32
  }
  func.func @transform_19(%arg0: i32) -> (i32, i32) {
    %c0_i32 = arith.constant 0 : i32
    %c0_i32_0 = arith.constant 0 : i32
    %c0_i32_1 = arith.constant 0 : i32
    return %c0_i32, %c0_i32_0 : i32, i32
  }
  func.func @transform_20(%arg0: i32) -> (i32, i32) {
    %c0_i32 = arith.constant 0 : i32
    %c0_i32_0 = arith.constant 0 : i32
    %c0_i32_1 = arith.constant 0 : i32
    return %c0_i32, %c0_i32_0 : i32, i32
  }
  func.func @transform_21(%arg0: i32) -> (i32, i32) {
    %c0_i32 = arith.constant 0 : i32
    %c0_i32_0 = arith.constant 0 : i32
    %c0_i32_1 = arith.constant 0 : i32
    return %c0_i32, %c0_i32_0 : i32, i32
  }
  func.func @transform_22(%arg0: i32) -> (i32, i32) {
    %c0_i32 = arith.constant 0 : i32
    %c0_i32_0 = arith.constant 0 : i32
    return %arg0, %c0_i32 : i32, i32
  }
}

</mosaic_0001>

<llo_original>
// kernel: tpu_custom_call.1
$region0: #{tpu_custom_call.1}
  #allocation0 [shape = 'u32[]', space=smem, size = 0x4, offset = 0x4, fixed_abs, tag = 'smem constant byte address 0x4 - core index']
  #allocation1 [shape = 'u32[72,128]{1,0:T(1,128)}', space=vmem, size = 0x9000, scoped, tag = 'internal scratch']
  #allocation2 [shape = 'f32[1,1]{1,0:T(1,128)S(1)}', space=vmem, size = 0x200, scoped, tag = 'scoped memory for tpu_custom_call.1']
  %s0 = inlined_call_operand.vmem [shape: f32[2,8,32], index: 0, kind: input, shape index: {}]
  %s1 = inlined_call_operand.hbm [shape: f32[2,8], index: 1, kind: input, shape index: {}]
  %s2 = inlined_call_operand.vmem [shape: bf16[32,32], index: 2, kind: input, shape index: {}]
  %s3 = inlined_call_operand.hbm [shape: f32[1,32], index: 3, kind: input, shape index: {}]
  %s4 = inlined_call_operand.vmem [shape: bf16[32,32], index: 4, kind: input, shape index: {}]
  %s5 = inlined_call_operand.hbm [shape: f32[1,32], index: 5, kind: input, shape index: {}]
  %s6 = inlined_call_operand.hbm [shape: bf16[32,32], index: 6, kind: input, shape index: {}]
  %s7 = inlined_call_operand.hbm [shape: f32[1,32], index: 7, kind: input, shape index: {}]
  %s8 = inlined_call_operand.vmem [shape: bf16[32,32], index: 8, kind: input, shape index: {}]
  %s9 = inlined_call_operand.hbm [shape: f32[1,32], index: 9, kind: input, shape index: {}]
  %s10 = inlined_call_operand.hbm [shape: bf16[32,64], index: 10, kind: input, shape index: {}]
  %s11 = inlined_call_operand.hbm [shape: f32[1,64], index: 11, kind: input, shape index: {}]
  %s12 = inlined_call_operand.vmem [shape: bf16[64,32], index: 12, kind: input, shape index: {}]
  %s13 = inlined_call_operand.hbm [shape: f32[1,32], index: 13, kind: input, shape index: {}]
  %s14 = inlined_call_operand.hbm [shape: f32[1,32], index: 14, kind: input, shape index: {}]
  %s15 = inlined_call_operand.hbm [shape: f32[1,32], index: 15, kind: input, shape index: {}]
  %s16 = inlined_call_operand.vmem [shape: f32[1,32], index: 16, kind: input, shape index: {}]
  %s17 = inlined_call_operand.vmem [shape: f32[1,32], index: 17, kind: input, shape index: {}]
  %s18 = inlined_call_operand.vmem [shape: bf16[32,16], index: 18, kind: input, shape index: {}]
  %s19 = inlined_call_operand.vmem [shape: f32[1,16], index: 19, kind: input, shape index: {}]
  %s20 = inlined_call_operand.vmem [shape: f32[1,16], index: 20, kind: input, shape index: {}]
  %s21 = inlined_call_operand.<no memory space> [shape: f32[1,1], index: 21, kind: input, shape index: {}]
  %s22 = inlined_call_operand.vmem [shape: f32[2,1], index: 22, kind: output, shape index: {}]
  %s23 = sld [smem:[#allocation0]]
  $region142: #{tpu_custom_call.1} parent=0
    _
  %s25 = ssub.s32 1, %s23
  %s26 = scalar_select 0, %s25, %s23
  %v27 = vstv %s21
  %28 = vst [vmem:[#allocation2] sm:$0x1] %v27
  $region1: #{tpu_custom_call.1} parent=0
    #allocation3 [shape = 'u8[1024]{0}', space=vmem, size = 0x400, scoped, tag = 'input window, operand 1, single buffered']
    #allocation4 [shape = 's32[1]{0}', space=sflag, size = 0x4, scoped, tag = 'scoped memory for tpu_custom_call.1']
    #allocation5 [shape = 'u8[512]{0}', space=vmem, size = 0x400, scoped, tag = 'input window, operand 3, single buffered']
    #allocation6 [shape = 's32[1]{0}', space=sflag, size = 0x4, scoped, tag = 'scoped memory for tpu_custom_call.1']
    #allocation7 [shape = 'u8[512]{0}', space=vmem, size = 0x400, scoped, tag = 'input window, operand 5, single buffered']
    #allocation8 [shape = 'u8[8192]{0}', space=vmem, size = 0x2000, scoped, tag = 'input window, operand 6, single buffered']
    #allocation9 [shape = 's32[1]{0}', space=sflag, size = 0x4, scoped, tag = 'scoped memory for tpu_custom_call.1']
    #allocation10 [shape = 'u8[512]{0}', space=vmem, size = 0x400, scoped, tag = 'input window, operand 7, single buffered']
    #allocation11 [shape = 'u8[512]{0}', space=vmem, size = 0x400, scoped, tag = 'input window, operand 9, single buffered']
    #allocation12 [shape = 's32[1]{0}', space=sflag, size = 0x4, scoped, tag = 'scoped memory for tpu_custom_call.1']
    #allocation13 [shape = 'u8[8192]{0}', space=vmem, size = 0x2000, scoped, tag = 'input window, operand 10, single buffered']
    #allocation14 [shape = 'u8[512]{0}', space=vmem, size = 0x400, scoped, tag = 'input window, operand 11, single buffered']
    #allocation15 [shape = 's32[1]{0}', space=sflag, size = 0x4, scoped, tag = 'scoped memory for tpu_custom_call.1']
    #allocation16 [shape = 'u8[512]{0}', space=vmem, size = 0x400, scoped, tag = 'input window, operand 13, single buffered']
    #allocation17 [shape = 'u8[512]{0}', space=vmem, size = 0x400, scoped, tag = 'input window, operand 14, single buffered']
    #allocation18 [shape = 's32[1]{0}', space=sflag, size = 0x4, scoped, tag = 'scoped memory for tpu_custom_call.1']
    #allocation19 [shape = 'u8[512]{0}', space=vmem, size = 0x400, scoped, tag = 'input window, operand 15, single buffered']
    %29 = vsyncpa [#allocation4], 0
    %30 = vsyncpa [#allocation6], 0
    %31 = vsyncpa [#allocation9], 0
    %32 = vsyncpa [#allocation12], 0
    %33 = vsyncpa [#allocation15], 0
    %34 = vsyncpa [#allocation18], 0
    // Predicated region
    $region2: #{tpu_custom_call.1} parent=1 // pred_check
      _
    $region3: #{tpu_custom_call.1} parent=1 // pred_check_branch
      %36 = sbr.rel (0) target = $region5
    $region4: #{tpu_custom_call.1} parent=1 // pred_region
      _
    $region5: #{tpu_custom_call.1} parent=1 // pred_fallthru
      _
    // Predicated region
    $region6: #{tpu_custom_call.1} parent=1 // pred_check
      _
    $region7: #{tpu_custom_call.1} parent=1 // pred_check_branch
      %38 = sbr.rel (0) target = $region9
    $region8: #{tpu_custom_call.1} parent=1 // pred_region
      %40 = vsyncadd [#allocation4], 0
      %s42 = sshll.u32 %s1, 4
      %s43 = int_to_ptr.hbm [resolvable:$true] %s42
      %s44 = sshll.u32 [#allocation3], 4
      %s45 = int_to_ptr.vmem [resolvable:$true] %s44
      %47 = dma.hbm_to_vmem [thread:$0]  %s43, 32, %s45, [#allocation4]
    $region9: #{tpu_custom_call.1} parent=1 // pred_fallthru
      _
    // Predicated region
    $region10: #{tpu_custom_call.1} parent=1 // pred_check
      _
    $region11: #{tpu_custom_call.1} parent=1 // pred_check_branch
      %49 = sbr.rel (0) target = $region13
    $region12: #{tpu_custom_call.1} parent=1 // pred_region
      _
    $region13: #{tpu_custom_call.1} parent=1 // pred_fallthru
      _
    // Predicated region
    $region14: #{tpu_custom_call.1} parent=1 // pred_check
      _
    $region15: #{tpu_custom_call.1} parent=1 // pred_check_branch
      %51 = sbr.rel (0) target = $region17
    $region16: #{tpu_custom_call.1} parent=1 // pred_region
      %53 = vsyncadd [#allocation6], 0
      %s55 = sshll.u32 %s3, 4
      %s56 = int_to_ptr.hbm [resolvable:$true] %s55
      %s57 = sshll.u32 [#allocation5], 4
      %s58 = int_to_ptr.vmem [resolvable:$true] %s57
      %60 = dma.hbm_to_vmem [thread:$0]  %s56, 16, %s58, [#allocation6]
    $region17: #{tpu_custom_call.1} parent=1 // pred_fallthru
      _
    // Predicated region
    $region18: #{tpu_custom_call.1} parent=1 // pred_check
      _
    $region19: #{tpu_custom_call.1} parent=1 // pred_check_branch
      %62 = sbr.rel (0) target = $region21
    $region20: #{tpu_custom_call.1} parent=1 // pred_region
      _
    $region21: #{tpu_custom_call.1} parent=1 // pred_fallthru
      _
    // Predicated region
    $region22: #{tpu_custom_call.1} parent=1 // pred_check
      _
    $region23: #{tpu_custom_call.1} parent=1 // pred_check_branch
      %64 = sbr.rel (0) target = $region25
    $region24: #{tpu_custom_call.1} parent=1 // pred_region
      %66 = vsyncadd [#allocation6], 0
      %s68 = sshll.u32 %s5, 4
      %s69 = int_to_ptr.hbm [resolvable:$true] %s68
      %s70 = sshll.u32 [#allocation7], 4
      %s71 = int_to_ptr.vmem [resolvable:$true] %s70
      %73 = dma.hbm_to_vmem [thread:$0]  %s69, 16, %s71, [#allocation6]
    $region25: #{tpu_custom_call.1} parent=1 // pred_fallthru
      _
    // Predicated region
    $region26: #{tpu_custom_call.1} parent=1 // pred_check
      _
    $region27: #{tpu_custom_call.1} parent=1 // pred_check_branch
      %75 = sbr.rel (0) target = $region29
    $region28: #{tpu_custom_call.1} parent=1 // pred_region
      %77 = vsyncadd [#allocation9], 0
      %s78 = sshll.u32 %s6, 4
      %s79 = int_to_ptr.hbm [resolvable:$true] %s78
      %s80 = sshll.u32 [#allocation8], 4
      %s81 = int_to_ptr.vmem [resolvable:$true] %s80
      %86 = dma.hbm_to_vmem [thread:$0]  %s79, 256, %s81, [#allocation9], 64, 64, 4
    $region29: #{tpu_custom_call.1} parent=1 // pred_fallthru
      _
    // Predicated region
    $region30: #{tpu_custom_call.1} parent=1 // pred_check
      _
    $region31: #{tpu_custom_call.1} parent=1 // pred_check_branch
      %88 = sbr.rel (0) target = $region33
    $region32: #{tpu_custom_call.1} parent=1 // pred_region
      %90 = vsyncadd [#allocation9], 0
      %s92 = sshll.u32 %s7, 4
      %s93 = int_to_ptr.hbm [resolvable:$true] %s92
      %s94 = sshll.u32 [#allocation10], 4
      %s95 = int_to_ptr.vmem [resolvable:$true] %s94
      %97 = dma.hbm_to_vmem [thread:$0]  %s93, 16, %s95, [#allocation9]
    $region33: #{tpu_custom_call.1} parent=1 // pred_fallthru
      _
    // Predicated region
    $region34: #{tpu_custom_call.1} parent=1 // pred_check
      _
    $region35: #{tpu_custom_call.1} parent=1 // pred_check_branch
      %99 = sbr.rel (0) target = $region37
    $region36: #{tpu_custom_call.1} parent=1 // pred_region
      _
    $region37: #{tpu_custom_call.1} parent=1 // pred_fallthru
      _
    // Predicated region
    $region38: #{tpu_custom_call.1} parent=1 // pred_check
      _
    $region39: #{tpu_custom_call.1} parent=1 // pred_check_branch
      %101 = sbr.rel (0) target = $region41
    $region40: #{tpu_custom_call.1} parent=1 // pred_region
      %103 = vsyncadd [#allocation12], 0
      %s105 = sshll.u32 %s9, 4
      %s106 = int_to_ptr.hbm [resolvable:$true] %s105
      %s107 = sshll.u32 [#allocation11], 4
      %s108 = int_to_ptr.vmem [resolvable:$true] %s107
      %110 = dma.hbm_to_vmem [thread:$0]  %s106, 16, %s108, [#allocation12]
    $region41: #{tpu_custom_call.1} parent=1 // pred_fallthru
      _
    // Predicated region
    $region42: #{tpu_custom_call.1} parent=1 // pred_check
      _
    $region43: #{tpu_custom_call.1} parent=1 // pred_check_branch
      %112 = sbr.rel (0) target = $region45
    $region44: #{tpu_custom_call.1} parent=1 // pred_region
      %114 = vsyncadd [#allocation12], 0
      %s115 = sshll.u32 %s10, 4
      %s116 = int_to_ptr.hbm [resolvable:$true] %s115
      %s117 = sshll.u32 [#allocation13], 4
      %s118 = int_to_ptr.vmem [resolvable:$true] %s117
      %123 = dma.hbm_to_vmem [thread:$0]  %s116, 256, %s118, [#allocation12], 64, 64, 4
    $region45: #{tpu_custom_call.1} parent=1 // pred_fallthru
      _
    // Predicated region
    $region46: #{tpu_custom_call.1} parent=1 // pred_check
      _
    $region47: #{tpu_custom_call.1} parent=1 // pred_check_branch
      %125 = sbr.rel (0) target = $region49
    $region48: #{tpu_custom_call.1} parent=1 // pred_region
      %127 = vsyncadd [#allocation15], 0
      %s129 = sshll.u32 %s11, 4
      %s130 = int_to_ptr.hbm [resolvable:$true] %s129
      %s131 = sshll.u32 [#allocation14], 4
      %s132 = int_to_ptr.vmem [resolvable:$true] %s131
      %134 = dma.hbm_to_vmem [thread:$0]  %s130, 16, %s132, [#allocation15]
    $region49: #{tpu_custom_call.1} parent=1 // pred_fallthru
      _
    // Predicated region
    $region50: #{tpu_custom_call.1} parent=1 // pred_check
      _
    $region51: #{tpu_custom_call.1} parent=1 // pred_check_branch
      %136 = sbr.rel (0) target = $region53
    $region52: #{tpu_custom_call.1} parent=1 // pred_region
      _
    $region53: #{tpu_custom_call.1} parent=1 // pred_fallthru
      _
    // Predicated region
    $region54: #{tpu_custom_call.1} parent=1 // pred_check
      _
    $region55: #{tpu_custom_call.1} parent=1 // pred_check_branch
      %138 = sbr.rel (0) target = $region57
    $region56: #{tpu_custom_call.1} parent=1 // pred_region
      %140 = vsyncadd [#allocation15], 0
      %s142 = sshll.u32 %s13, 4
      %s143 = int_to_ptr.hbm [resolvable:$true] %s142
      %s144 = sshll.u32 [#allocation16], 4
      %s145 = int_to_ptr.vmem [resolvable:$true] %s144
      %147 = dma.hbm_to_vmem [thread:$0]  %s143, 16, %s145, [#allocation15]
    $region57: #{tpu_custom_call.1} parent=1 // pred_fallthru
      _
    // Predicated region
    $region58: #{tpu_custom_call.1} parent=1 // pred_check
      _
    $region59: #{tpu_custom_call.1} parent=1 // pred_check_branch
      %149 = sbr.rel (0) target = $region61
    $region60: #{tpu_custom_call.1} parent=1 // pred_region
      %151 = vsyncadd [#allocation18], 0
      %s153 = sshll.u32 %s14, 4
      %s154 = int_to_ptr.hbm [resolvable:$true] %s153
      %s155 = sshll.u32 [#allocation17], 4
      %s156 = int_to_ptr.vmem [resolvable:$true] %s155
      %158 = dma.hbm_to_vmem [thread:$0]  %s154, 16, %s156, [#allocation18]
    $region61: #{tpu_custom_call.1} parent=1 // pred_fallthru
      _
    // Predicated region
    $region62: #{tpu_custom_call.1} parent=1 // pred_check
      _
    $region63: #{tpu_custom_call.1} parent=1 // pred_check_branch
      %160 = sbr.rel (0) target = $region65
    $region64: #{tpu_custom_call.1} parent=1 // pred_region
      %162 = vsyncadd [#allocation18], 0
      %s164 = sshll.u32 %s15, 4
      %s165 = int_to_ptr.hbm [resolvable:$true] %s164
      %s166 = sshll.u32 [#allocation19], 4
      %s167 = int_to_ptr.vmem [resolvable:$true] %s166
      %169 = dma.hbm_to_vmem [thread:$0]  %s165, 16, %s167, [#allocation18]
    $region65: #{tpu_custom_call.1} parent=1 // pred_fallthru
      _
    // Predicated region
    $region66: #{tpu_custom_call.1} parent=1 // pred_check
      _
    $region67: #{tpu_custom_call.1} parent=1 // pred_check_branch
      %171 = sbr.rel (0) target = $region69
    $region68: #{tpu_custom_call.1} parent=1 // pred_region
      _
    $region69: #{tpu_custom_call.1} parent=1 // pred_fallthru
      _
    // Predicated region
    $region70: #{tpu_custom_call.1} parent=1 // pred_check
      _
    $region71: #{tpu_custom_call.1} parent=1 // pred_check_branch
      %173 = sbr.rel (0) target = $region73
    $region72: #{tpu_custom_call.1} parent=1 // pred_region
      _
    $region73: #{tpu_custom_call.1} parent=1 // pred_fallthru
      _
    // Predicated region
    $region74: #{tpu_custom_call.1} parent=1 // pred_check
      _
    $region75: #{tpu_custom_call.1} parent=1 // pred_check_branch
      %175 = sbr.rel (0) target = $region77
    $region76: #{tpu_custom_call.1} parent=1 // pred_region
      _
    $region77: #{tpu_custom_call.1} parent=1 // pred_fallthru
      _
    // Predicated region
    $region78: #{tpu_custom_call.1} parent=1 // pred_check
      _
    $region79: #{tpu_custom_call.1} parent=1 // pred_check_branch
      %177 = sbr.rel (0) target = $region81
    $region80: #{tpu_custom_call.1} parent=1 // pred_region
      _
    $region81: #{tpu_custom_call.1} parent=1 // pred_fallthru
      _
    // Predicated region
    $region82: #{tpu_custom_call.1} parent=1 // pred_check
      _
    $region83: #{tpu_custom_call.1} parent=1 // pred_check_branch
      %179 = sbr.rel (0) target = $region85
    $region84: #{tpu_custom_call.1} parent=1 // pred_region
      _
    $region85: #{tpu_custom_call.1} parent=1 // pred_fallthru
      _
    // Predicated region
    $region86: #{tpu_custom_call.1} parent=1 // pred_check
      _
    $region87: #{tpu_custom_call.1} parent=1 // pred_check_branch
      %181 = sbr.rel (0) target = $region89
    $region88: #{tpu_custom_call.1} parent=1 // pred_region
      _
    $region89: #{tpu_custom_call.1} parent=1 // pred_fallthru
      _
    // Predicated region
    $region90: #{tpu_custom_call.1} parent=1 // pred_check
      _
    $region91: #{tpu_custom_call.1} parent=1 // pred_check_branch
      %183 = sbr.rel (0) target = $region93
    $region92: #{tpu_custom_call.1} parent=1 // pred_region
      %185 = dma.done [#allocation4], 32
    $region93: #{tpu_custom_call.1} parent=1 // pred_fallthru
      _
    // Predicated region
    $region94: #{tpu_custom_call.1} parent=1 // pred_check
      _
    $region95: #{tpu_custom_call.1} parent=1 // pred_check_branch
      %187 = sbr.rel (0) target = $region97
    $region96: #{tpu_custom_call.1} parent=1 // pred_region
      %189 = dma.done [#allocation6], 16
    $region97: #{tpu_custom_call.1} parent=1 // pred_fallthru
      _
    // Predicated region
    $region98: #{tpu_custom_call.1} parent=1 // pred_check
      _
    $region99: #{tpu_custom_call.1} parent=1 // pred_check_branch
      %191 = sbr.rel (0) target = $region101
    $region100: #{tpu_custom_call.1} parent=1 // pred_region
      %193 = dma.done [#allocation6], 16
    $region101: #{tpu_custom_call.1} parent=1 // pred_fallthru
      _
    // Predicated region
    $region102: #{tpu_custom_call.1} parent=1 // pred_check
      _
    $region103: #{tpu_custom_call.1} parent=1 // pred_check_branch
      %195 = sbr.rel (0) target = $region105
    $region104: #{tpu_custom_call.1} parent=1 // pred_region
      %197 = dma.done [#allocation9], 256
    $region105: #{tpu_custom_call.1} parent=1 // pred_fallthru
      _
    // Predicated region
    $region106: #{tpu_custom_call.1} parent=1 // pred_check
      _
    $region107: #{tpu_custom_call.1} parent=1 // pred_check_branch
      %199 = sbr.rel (0) target = $region109
    $region108: #{tpu_custom_call.1} parent=1 // pred_region
      %201 = dma.done [#allocation9], 16
    $region109: #{tpu_custom_call.1} parent=1 // pred_fallthru
      _
    // Predicated region
    $region110: #{tpu_custom_call.1} parent=1 // pred_check
      _
    $region111: #{tpu_custom_call.1} parent=1 // pred_check_branch
      %203 = sbr.rel (0) target = $region113
    $region112: #{tpu_custom_call.1} parent=1 // pred_region
      %205 = dma.done [#allocation12], 16
    $region113: #{tpu_custom_call.1} parent=1 // pred_fallthru
      _
    // Predicated region
    $region114: #{tpu_custom_call.1} parent=1 // pred_check
      _
    $region115: #{tpu_custom_call.1} parent=1 // pred_check_branch
      %207 = sbr.rel (0) target = $region117
    $region116: #{tpu_custom_call.1} parent=1 // pred_region
      %209 = dma.done [#allocation12], 256
    $region117: #{tpu_custom_call.1} parent=1 // pred_fallthru
      _
    // Predicated region
    $region118: #{tpu_custom_call.1} parent=1 // pred_check
      _
    $region119: #{tpu_custom_call.1} parent=1 // pred_check_branch
      %211 = sbr.rel (0) target = $region121
    $region120: #{tpu_custom_call.1} parent=1 // pred_region
      %213 = dma.done [#allocation15], 16
    $region121: #{tpu_custom_call.1} parent=1 // pred_fallthru
      _
    // Predicated region
    $region122: #{tpu_custom_call.1} parent=1 // pred_check
      _
    $region123: #{tpu_custom_call.1} parent=1 // pred_check_branch
      %215 = sbr.rel (0) target = $region125
    $region124: #{tpu_custom_call.1} parent=1 // pred_region
      %217 = dma.done [#allocation15], 16
    $region125: #{tpu_custom_call.1} parent=1 // pred_fallthru
      _
    // Predicated region
    $region126: #{tpu_custom_call.1} parent=1 // pred_check
      _
    $region127: #{tpu_custom_call.1} parent=1 // pred_check_branch
      %219 = sbr.rel (0) target = $region129
    $region128: #{tpu_custom_call.1} parent=1 // pred_region
      %221 = dma.done [#allocation18], 16
    $region129: #{tpu_custom_call.1} parent=1 // pred_fallthru
      _
    // Predicated region
    $region130: #{tpu_custom_call.1} parent=1 // pred_check
      _
    $region131: #{tpu_custom_call.1} parent=1 // pred_check_branch
      %223 = sbr.rel (0) target = $region133
    $region132: #{tpu_custom_call.1} parent=1 // pred_region
      %225 = dma.done [#allocation18], 16
    $region133: #{tpu_custom_call.1} parent=1 // pred_fallthru
      _
    %v227 = vld [vmem:[%s0] sm:$0xff]
    %v228 = vld [vmem:[%s0 + $0x8] sm:$0xff]
    %v229 = vld [vmem:[#allocation3] sm:$0x3]
    %v230 = vpack.c.bf16 %v228, %v227
    %v231 = vld [vmem:[%s4] sm:$0xf]
    %v232 = vld [vmem:[%s4 + $0x4] sm:$0xf]
    %v233 = vld [vmem:[%s4 + $0x8] sm:$0xf]
    %v234 = vld [vmem:[%s4 + $0xc] sm:$0xf]
    %v235 = vld [vmem:[#allocation7] sm:$0x1]
    %v237 = vperm.slane %v235, 0
    %v243 = vunpack.c.l.b16 %v231
    %v244 = vunpack.c.l.b16 %v232
    %v245 = vunpack.c.l.b16 %v233
    %v246 = vunpack.c.l.b16 %v234
    %v247 = vpack.c.b16 %v244, %v243
    %v248 = vpack.c.b16 %v246, %v245
    %vm251 = vcmask 261120
    %v253 = vsel %vm251, %v230, 0
    %255 = vmatpush.bf16.msra.mxu0 0
    %256 = vmatpush.bf16.msra.mxu0 0
    %257 = vmatpush.bf16.msra.mxu0 0
    %258 = vmatpush.bf16.msra.mxu0 0
    %259 = vmatpush.bf16.msra.mxu0 0
    %260 = vmatpush.bf16.msra.mxu0 0
    %261 = vmatpush.bf16.msra.mxu0 %v248
    %262 = vmatpush.bf16.msra.mxu0 %v247
    %263 = vmatmul.bf16.gmra.mxu0 %v253
    %v264 = vpop.f32.mrf.mxu0
    %v265 = vadd.f32 %v237, %v264
    %v266 = vpop.f32.mrf.mxu0
    %v267 = vadd.f32 %v237, %v266
    %268 = vdwg.mxu0
    %v269 = vld [vmem:[#allocation8] sm:$0xf]
    %v270 = vld [vmem:[#allocation8 + $0x4] sm:$0xf]
    %v271 = vld [vmem:[#allocation8 + $0x8] sm:$0xf]
    %v272 = vld [vmem:[#allocation8 + $0xc] sm:$0xf]
    %v273 = vld [vmem:[#allocation10] sm:$0x1]
    %v275 = vperm.slane %v273, 0
    %v281 = vunpack.c.l.b16 %v269
    %v282 = vunpack.c.l.b16 %v270
    %v283 = vunpack.c.l.b16 %v271
    %v284 = vunpack.c.l.b16 %v272
    %v285 = vpack.c.b16 %v282, %v281
    %v286 = vpack.c.b16 %v284, %v283
    %289 = vmatpush.bf16.msra.mxu0 0
    %290 = vmatpush.bf16.msra.mxu0 0
    %291 = vmatpush.bf16.msra.mxu0 0
    %292 = vmatpush.bf16.msra.mxu0 0
    %293 = vmatpush.bf16.msra.mxu0 0
    %294 = vmatpush.bf16.msra.mxu0 0
    %295 = vmatpush.bf16.msra.mxu0 %v286
    %296 = vmatpush.bf16.msra.mxu0 %v285
    %297 = vmatmul.bf16.gmra.mxu0 %v253
    %v298 = vpop.f32.mrf.mxu0
    %v299 = vadd.f32 %v275, %v298
    %v300 = vpop.f32.mrf.mxu0
    %v301 = vadd.f32 %v275, %v300
    %302 = vdwg.mxu0
    %v303 = vpack.c.bf16 %v227, %v227
    %v304 = vpack.c.bf16 %v228, %v228
    %v305 = vld [vmem:[%s2] sm:$0xf]
    %v306 = vld [vmem:[%s2 + $0x4] sm:$0xf]
    %v307 = vld [vmem:[%s2 + $0x8] sm:$0xf]
    %v308 = vld [vmem:[%s2 + $0xc] sm:$0xf]
    %v309 = vld [vmem:[#allocation5] sm:$0x1]
    %v311 = vperm.slane %v309, 0
    %v315 = vunpack.c.l.b16 %v303
    %v316 = vunpack.c.l.b16 %v304
    %v317 = vrot.slane %v316, 7
    %vm318 = vcmask 1041409
    %v319 = vsel %vm318, %v317, %v315
    %v320 = vpack.c.b16 %v319, %v319
    %v325 = vunpack.c.l.b16 %v305
    %v326 = vunpack.c.l.b16 %v306
    %v327 = vunpack.c.l.b16 %v307
    %v328 = vunpack.c.l.b16 %v308
    %v329 = vpack.c.b16 %v326, %v325
    %v330 = vpack.c.b16 %v328, %v327
    %v334 = vsel %vm251, %v320, 0
    %336 = vmatpush.bf16.msra.mxu0 0
    %337 = vmatpush.bf16.msra.mxu0 0
    %338 = vmatpush.bf16.msra.mxu0 0
    %339 = vmatpush.bf16.msra.mxu0 0
    %340 = vmatpush.bf16.msra.mxu0 0
    %341 = vmatpush.bf16.msra.mxu0 0
    %342 = vmatpush.bf16.msra.mxu0 %v330
    %343 = vmatpush.bf16.msra.mxu0 %v329
    %344 = vmatmul.bf16.gmra.mxu0 %v334
    %v345 = vpop.f32.mrf.mxu0
    %v346 = vadd.f32 %v311, %v345
    %v347 = vpop.f32.mrf.mxu0
    %348 = vdwg.mxu0
    %v350 = vrot.slane %v346, 1
    %v351 = vperm.slane %v346, 0
    %v352 = vperm.slane %v350, 0
    %v355 = vmul.f32 %v351, %v265
    %v356 = vmul.f32 %v352, %v267
    %v357 = vsel %vm251, %v355, 0.0
    %358 = vadd.xlane.f32.xlu0 %v357
    %v359 = vpop.xlane.xlu0 %358
    %v360 = vsel %vm251, %v356, 0.0
    %361 = vadd.xlane.f32.xlu0 %v360
    %v362 = vpop.xlane.xlu0 %361
    %v363 = vmul.f32 %v359, 0.17677669
    %v364 = vmul.f32 %v362, 0.17677669
    %v365 = vsub.f32 1.0, %v229
    %v366 = vmul.f32 %v365, -1e+09
    %v368 = vperm.slane %v366, 0
    %v369 = vlaneseq
    %v370 = vshrl.u32 %v369, 7
    %372 = vset.pattern.permute.xlu0 %v370
    %373 = vperm.xlu0 %372, %v368
    %v374 = vpop.permute.xlu0 %373
    %v375 = vperm.slane %v366, 1
    %v376 = vlaneseq
    %v377 = vshrl.u32 %v376, 7
    %379 = vset.pattern.permute.xlu0 %v377
    %380 = vperm.xlu0 %379, %v375
    %v381 = vpop.permute.xlu0 %380
    %v384 = vadd.f32 %v363, %v374
    %v385 = vadd.f32 %v364, %v381
    %388 = vset.pattern.permute.xlu0 0
    %389 = vperm.xlu0 %388, %v384
    %v390 = vpop.permute.xlu0 %389
    %391 = vset.pattern.permute.xlu0 0
    %392 = vperm.xlu0 %391, %v385
    %v393 = vpop.permute.xlu0 %392
    %v394 = vlaneseq
    %v395 = vand.u32 %v394, 127
    %v396 = vperm.slane %v390, %v395
    %v397 = vperm.slane %v393, %v395
    %v398 = vsel %vm318, %v397, %v396
    %vm400 = vcmask 58368
    %v401 = vsel %vm400, %v398, -inf
    %402 = vmax.xlane.f32.xlu0 %v401
    %v403 = vpop.xlane.xlu0 %402
    %v405 = vperm.slane %v403, 0
    %v406 = vperm.slane %v403, 1
    %v409 = vsub.f32 %v384, %v405
    %v410 = vsub.f32 %v385, %v406
    %v411 = vmul.f32 %v409, 1.442695
    %v412 = vpow.pop %v411
    %v413 = vmul.f32 %v410, 1.442695
    %v414 = vpow.pop %v413
    %417 = vset.pattern.permute.xlu0 0
    %418 = vperm.xlu0 %417, %v412
    %v419 = vpop.permute.xlu0 %418
    %420 = vset.pattern.permute.xlu0 0
    %421 = vperm.xlu0 %420, %v414
    %v422 = vpop.permute.xlu0 %421
    %v423 = vperm.slane %v419, %v395
    %v424 = vperm.slane %v422, %v395
    %v425 = vsel %vm318, %v424, %v423
    %v427 = vsel %vm400, %v425, 0.0
    %428 = vadd.xlane.f32.xlu0 %v427
    %v429 = vpop.xlane.xlu0 %428
    %v431 = vperm.slane %v429, 0
    %v432 = vperm.slane %v429, 1
    %v435 = vrcp.pop %v431
    %v436 = vmul.f32 %v431, %v435
    %v437 = vsub.f32 1.0, %v436
    %v438 = vmul.f32 %v435, %v437
    %v439 = vadd.f32 %v435, %v438
    %vm440 = vweird.f32 %v431
    %vm441 = vweird.f32 %v435
    %vm442 = vmor %vm440, %vm441
    %v443 = vsel %vm442, %v435, %v439
    %v444 = vand.u32 2147483647, %v431
    %vm445 = vcmp.eq.f32.partialorder %v444, 8.507059e+37
    %v446 = vand.u32 %v431, 2147483648
    %v447 = vor.u32 1.1754944e-38, %v446
    %v448 = vsel %vm445, %v447, %v443
    %v449 = vmul.f32 %v412, %v448
    %v450 = vrcp.pop %v432
    %v451 = vmul.f32 %v432, %v450
    %v452 = vsub.f32 1.0, %v451
    %v453 = vmul.f32 %v450, %v452
    %v454 = vadd.f32 %v450, %v453
    %vm455 = vweird.f32 %v432
    %vm456 = vweird.f32 %v450
    %vm457 = vmor %vm455, %vm456
    %v458 = vsel %vm457, %v450, %v454
    %v459 = vand.u32 2147483647, %v432
    %vm460 = vcmp.eq.f32.partialorder %v459, 8.507059e+37
    %v461 = vand.u32 %v432, 2147483648
    %v462 = vor.u32 1.1754944e-38, %v461
    %v463 = vsel %vm460, %v462, %v458
    %v464 = vmul.f32 %v414, %v463
    %466 = vset.pattern.permute.xlu0 0
    %467 = vperm.xlu0 %466, %v449
    %v468 = vpop.permute.xlu0 %467
    %471 = vset.pattern.permute.xlu0 0
    %472 = vperm.xlu0 %471, %v464
    %v473 = vpop.permute.xlu0 %472
    %v475 = vmul.f32 %v468, %v299
    %v476 = vmul.f32 %v473, %v301
    %v477 = vsel %vm251, %v475, 0.0
    %v478 = vrot.slane %v477, 4
    %v479 = vadd.f32 %v477, %v478
    %v480 = vrot.slane %v479, 2
    %v481 = vadd.f32 %v479, %v480
    %v482 = vrot.slane %v481, 1
    %v483 = vadd.f32 %v481, %v482
    %v484 = vsel %vm251, %v476, 0.0
    %v485 = vrot.slane %v484, 4
    %v486 = vadd.f32 %v484, %v485
    %v487 = vrot.slane %v486, 2
    %v488 = vadd.f32 %v486, %v487
    %v489 = vrot.slane %v488, 1
    %v490 = vadd.f32 %v488, %v489
    %v491 = vpack.c.bf16 %v483, %v483
    %v492 = vpack.c.bf16 %v490, %v490
    %v493 = vld [vmem:[%s8] sm:$0xf]
    %v494 = vld [vmem:[%s8 + $0x4] sm:$0xf]
    %v495 = vld [vmem:[%s8 + $0x8] sm:$0xf]
    %v496 = vld [vmem:[%s8 + $0xc] sm:$0xf]
    %v497 = vld [vmem:[#allocation11] sm:$0x1]
    %v499 = vperm.slane %v497, 0
    %v503 = vunpack.c.l.b16 %v491
    %v504 = vunpack.c.l.b16 %v492
    %v505 = vsel %vm318, %v504, %v503
    %v506 = vpack.c.b16 %v505, %v505
    %v511 = vunpack.c.l.b16 %v493
    %v512 = vunpack.c.l.b16 %v494
    %v513 = vunpack.c.l.b16 %v495
    %v514 = vunpack.c.l.b16 %v496
    %v515 = vpack.c.b16 %v512, %v511
    %v516 = vpack.c.b16 %v514, %v513
    %v520 = vsel %vm251, %v506, 0
    %522 = vmatpush.bf16.msra.mxu0 0
    %523 = vmatpush.bf16.msra.mxu0 0
    %524 = vmatpush.bf16.msra.mxu0 0
    %525 = vmatpush.bf16.msra.mxu0 0
    %526 = vmatpush.bf16.msra.mxu0 0
    %527 = vmatpush.bf16.msra.mxu0 0
    %528 = vmatpush.bf16.msra.mxu0 %v516
    %529 = vmatpush.bf16.msra.mxu0 %v515
    %530 = vmatmul.bf16.gmra.mxu0 %v520
    %v531 = vpop.f32.mrf.mxu0
    %v532 = vadd.f32 %v499, %v531
    %v533 = vpop.f32.mrf.mxu0
    %534 = vdwg.mxu0
    %v536 = vrot.slane %v532, 1
    %v539 = vadd.f32 %v227, %v532
    %v540 = vadd.f32 %v228, %v536
    %v543 = vrot.slane %v540, 7
    %v544 = vsel %vm318, %v543, %v539
    %vm546 = vcmask 254976
    %v547 = vsel %vm546, %v544, 0.0
    %548 = vadd.xlane.f32.xlu0 %v547
    %v549 = vpop.xlane.xlu0 %548
    %v550 = vrcp.pop 32.0
    %v551 = vmul.f32 32.0, %v550
    %v552 = vsub.f32 1.0, %v551
    %v553 = vmul.f32 %v550, %v552
    %v554 = vadd.f32 %v550, %v553
    %vm555 = vweird.f32 %v550
    %v556 = vsel %vm555, %v550, %v554
    %v557 = vmul.f32 %v549, %v556
    %v559 = vrot.slane %v557, 1
    %v562 = vsub.f32 %v539, %v557
    %v563 = vsub.f32 %v540, %v559
    %v564 = vmul.f32 %v562, %v562
    %v565 = vmul.f32 %v563, %v563
    %v568 = vrot.slane %v565, 7
    %v569 = vsel %vm318, %v568, %v564
    %v571 = vsel %vm546, %v569, 0.0
    %572 = vadd.xlane.f32.xlu0 %v571
    %v573 = vpop.xlane.xlu0 %572
    %v574 = vmul.f32 %v573, %v556
    %v575 = vadd.f32 %v574, 1e-12
    %v576 = vrsqrt.pop %v575
    %v577 = vmul.f32 %v576, %v575
    %v578 = vmul.f32 %v577, %v576
    %v579 = vmul.f32 0.5, %v578
    %v580 = vsub.f32 1.5, %v579
    %v581 = vmul.f32 %v576, %v580
    %vm582 = vweird.f32 %v575
    %vm583 = vweird.f32 %v576
    %vm584 = vmor %vm582, %vm583
    %v585 = vsel %vm584, %v576, %v581
    %v587 = vrot.slane %v585, 1
    %v590 = vmul.f32 %v562, %v585
    %v591 = vmul.f32 %v563, %v587
    %v592 = vld [vmem:[#allocation17] sm:$0x1]
    %v594 = vperm.slane %v592, 0
    %v596 = vmul.f32 %v590, %v594
    %v597 = vmul.f32 %v591, %v594
    %v598 = vld [vmem:[#allocation19] sm:$0x1]
    %v600 = vperm.slane %v598, 0
    %v602 = vadd.f32 %v596, %v600
    %v603 = vadd.f32 %v597, %v600
    %v604 = vpack.c.bf16 %v602, %v602
    %v605 = vpack.c.bf16 %v603, %v603
    %v606 = vld [vmem:[#allocation13] sm:$0xf]
    %v607 = vld [vmem:[#allocation13 + $0x4] sm:$0xf]
    %v608 = vld [vmem:[#allocation13 + $0x8] sm:$0xf]
    %v609 = vld [vmem:[#allocation13 + $0xc] sm:$0xf]
    %v610 = vld [vmem:[#allocation14] sm:$0x1]
    %v612 = vperm.slane %v610, 0
    %v616 = vunpack.c.l.b16 %v604
    %v617 = vunpack.c.l.b16 %v605
    %v618 = vrot.slane %v617, 7
    %v619 = vsel %vm318, %v618, %v616
    %v620 = vpack.c.b16 %v619, %v619
    %v625 = vunpack.c.l.b16 %v606
    %v626 = vunpack.c.l.b16 %v607
    %v627 = vunpack.c.l.b16 %v608
    %v628 = vunpack.c.l.b16 %v609
    %v629 = vpack.c.b16 %v626, %v625
    %v630 = vpack.c.b16 %v628, %v627
    %v634 = vsel %vm251, %v620, 0
    %636 = vmatpush.bf16.msra.mxu0 0
    %637 = vmatpush.bf16.msra.mxu0 0
    %638 = vmatpush.bf16.msra.mxu0 0
    %639 = vmatpush.bf16.msra.mxu0 0
    %640 = vmatpush.bf16.msra.mxu0 0
    %641 = vmatpush.bf16.msra.mxu0 0
    %642 = vmatpush.bf16.msra.mxu0 %v630
    %643 = vmatpush.bf16.msra.mxu0 %v629
    %644 = vmatmul.bf16.gmra.mxu0 %v634
    %v645 = vpop.f32.mrf.mxu0
    %v646 = vadd.f32 %v612, %v645
    %v647 = vpop.f32.mrf.mxu0
    %648 = vdwg.mxu0
    %v649 = vmax.f32 %v646, 0.0
    %v650 = vpack.c.bf16 %v649, %v649
    %v651 = vld [vmem:[%s12] sm:$0xf]
    %v652 = vld [vmem:[%s12 + $0x4] sm:$0xf]
    %v653 = vld [vmem:[%s12 + $0x8] sm:$0xf]
    %v654 = vld [vmem:[%s12 + $0xc] sm:$0xf]
    %v655 = vld [vmem:[%s12 + $0x10] sm:$0xf]
    %v656 = vld [vmem:[%s12 + $0x14] sm:$0xf]
    %v657 = vld [vmem:[%s12 + $0x18] sm:$0xf]
    %v658 = vld [vmem:[%s12 + $0x1c] sm:$0xf]
    %v659 = vld [vmem:[#allocation16] sm:$0x1]
    %v661 = vperm.slane %v659, 0
    %v671 = vunpack.c.l.b16 %v651
    %v672 = vunpack.c.l.b16 %v652
    %v673 = vunpack.c.l.b16 %v653
    %v674 = vunpack.c.l.b16 %v654
    %v675 = vunpack.c.l.b16 %v655
    %v676 = vunpack.c.l.b16 %v656
    %v677 = vunpack.c.l.b16 %v657
    %v678 = vunpack.c.l.b16 %v658
    %v679 = vpack.c.b16 %v672, %v671
    %v680 = vpack.c.b16 %v674, %v673
    %v681 = vpack.c.b16 %v676, %v675
    %v682 = vpack.c.b16 %v678, %v677
    %vm687 = vcmask 523264
    %v689 = vsel %vm687, %v650, 0
    %691 = vmatpush.bf16.msra.mxu0 0
    %692 = vmatpush.bf16.msra.mxu0 0
    %693 = vmatpush.bf16.msra.mxu0 0
    %694 = vmatpush.bf16.msra.mxu0 0
    %695 = vmatpush.bf16.msra.mxu0 %v682
    %696 = vmatpush.bf16.msra.mxu0 %v681
    %697 = vmatpush.bf16.msra.mxu0 %v680
    %698 = vmatpush.bf16.msra.mxu0 %v679
    %699 = vmatmul.bf16.gmra.mxu0 %v689
    %v700 = vpop.f32.mrf.mxu0
    %v701 = vadd.f32 %v661, %v700
    %v702 = vpop.f32.mrf.mxu0
    %703 = vdwg.mxu0
    %v705 = vrot.slane %v701, 1
    %v708 = vadd.f32 %v602, %v701
    %v709 = vadd.f32 %v603, %v705
    %v712 = vrot.slane %v709, 7
    %v713 = vsel %vm318, %v712, %v708
    %v715 = vsel %vm546, %v713, 0.0
    %716 = vadd.xlane.f32.xlu0 %v715
    %v717 = vpop.xlane.xlu0 %716
    %v718 = vmul.f32 %v717, %v556
    %v720 = vrot.slane %v718, 1
    %v723 = vsub.f32 %v708, %v718
    %v724 = vsub.f32 %v709, %v720
    %v725 = vmul.f32 %v723, %v723
    %v726 = vmul.f32 %v724, %v724
    %v729 = vrot.slane %v726, 7
    %v730 = vsel %vm318, %v729, %v725
    %v732 = vsel %vm546, %v730, 0.0
    %733 = vadd.xlane.f32.xlu0 %v732
    %v734 = vpop.xlane.xlu0 %733
    %v735 = vmul.f32 %v734, %v556
    %v736 = vadd.f32 %v735, 1e-12
    %v737 = vrsqrt.pop %v736
    %v738 = vmul.f32 %v737, %v736
    %v739 = vmul.f32 %v738, %v737
    %v740 = vmul.f32 0.5, %v739
    %v741 = vsub.f32 1.5, %v740
    %v742 = vmul.f32 %v737, %v741
    %vm743 = vweird.f32 %v736
    %vm744 = vweird.f32 %v737
    %vm745 = vmor %vm743, %vm744
    %v746 = vsel %vm745, %v737, %v742
    %v748 = vrot.slane %v746, 1
    %v751 = vmul.f32 %v723, %v746
    %v752 = vmul.f32 %v724, %v748
    %v753 = vld [vmem:[%s16] sm:$0x1]
    %v755 = vperm.slane %v753, 0
    %v757 = vmul.f32 %v751, %v755
    %v758 = vmul.f32 %v752, %v755
    %v759 = vld [vmem:[%s17] sm:$0x1]
    %v761 = vperm.slane %v759, 0
    %v763 = vadd.f32 %v757, %v761
    %v764 = vadd.f32 %v758, %v761
    %v765 = vpack.c.bf16 %v763, %v763
    %v766 = vpack.c.bf16 %v764, %v764
    %v767 = vld [vmem:[%s18] sm:$0xf]
    %v768 = vld [vmem:[%s18 + $0x4] sm:$0xf]
    %v769 = vld [vmem:[%s18 + $0x8] sm:$0xf]
    %v770 = vld [vmem:[%s18 + $0xc] sm:$0xf]
    %v771 = vld [vmem:[%s19] sm:$0x1]
    %v773 = vperm.slane %v771, 0
    %v777 = vunpack.c.l.b16 %v765
    %v778 = vunpack.c.l.b16 %v766
    %v779 = vrot.slane %v778, 7
    %v780 = vsel %vm318, %v779, %v777
    %v781 = vpack.c.b16 %v780, %v780
    %v786 = vunpack.c.l.b16 %v767
    %v787 = vunpack.c.l.b16 %v768
    %v788 = vunpack.c.l.b16 %v769
    %v789 = vunpack.c.l.b16 %v770
    %v790 = vpack.c.b16 %v787, %v786
    %v791 = vpack.c.b16 %v789, %v788
    %v795 = vsel %vm251, %v781, 0
    %797 = vmatpush.bf16.msra.mxu0 0
    %798 = vmatpush.bf16.msra.mxu0 0
    %799 = vmatpush.bf16.msra.mxu0 0
    %800 = vmatpush.bf16.msra.mxu0 0
    %801 = vmatpush.bf16.msra.mxu0 0
    %802 = vmatpush.bf16.msra.mxu0 0
    %803 = vmatpush.bf16.msra.mxu0 %v791
    %804 = vmatpush.bf16.msra.mxu0 %v790
    %805 = vmatmul.bf16.gmra.mxu0 %v795
    %v806 = vpop.f32.mrf.mxu0
    %v807 = vadd.f32 %v773, %v806
    %v808 = vpop.f32.mrf.mxu0
    %809 = vdwg.mxu0
    %v810 = vmax.f32 %v807, 0.0
    %v811 = vld [vmem:[%s20] sm:$0x1]
    %v813 = vperm.slane %v811, 0
    %v815 = vmul.f32 %v810, %v813
    %vm816 = vcmask 123904
    %v817 = vsel %vm816, %v815, 0.0
    %818 = vadd.xlane.f32.xlu0 %v817
    %v819 = vpop.xlane.xlu0 %818
    %v820 = vld [vmem:[#allocation2] sm:$0x1]
    %v822 = vperm.slane %v820, 0
    %v824 = vadd.f32 %v819, %v822
    %vm825 = vcmask 1024
    %826 = vst.msk [vmem:[%s22] sm:$0x3] %vm825, %v824
    // Predicated region
    $region134: #{tpu_custom_call.1} parent=1 // pred_check
      _
    $region135: #{tpu_custom_call.1} parent=1 // pred_check_branch
      %828 = sbr.rel (0) target = $region137
    $region136: #{tpu_custom_call.1} parent=1 // pred_region
      _
    $region137: #{tpu_custom_call.1} parent=1 // pred_fallthru
      _
    // Predicated region
    $region138: #{tpu_custom_call.1} parent=1 // pred_check
      _
    $region139: #{tpu_custom_call.1} parent=1 // pred_check_branch
      %830 = sbr.rel (0) target = $region141
    $region140: #{tpu_custom_call.1} parent=1 // pred_region
      _
    $region141: #{tpu_custom_call.1} parent=1 // pred_fallthru
      _
    %831 = vsyncpa [#allocation4], 1
    %832 = vsyncpa [#allocation6], 1
    %833 = vsyncpa [#allocation9], 1
    %834 = vsyncpa [#allocation12], 1
    %835 = vsyncpa [#allocation15], 1
    %836 = vsyncpa [#allocation18], 1

</llo_original>
